<compile_context>
chip_gen: v7x
topology: tpu7x:2x2x1
jax: 0.10.0
libtpu: 0.0.40
codegen_flags: <defaults>
</compile_context>

<pallas_src>
import jax
import jax.numpy as jnp
from jax.experimental import pallas as pl
from jax.experimental.pallas import tpu as pltpu

INPUT_DIM = 3 * 3 * 4   # 36, fixed by x(s)
HIDDEN = 12             # fc1 out
OUTPUT_DIM = 32         # "output_dim" ctor arg (small hidden size chosen)
N_ACTIONS = 4           # fc2 out
LANE = 128              # TPU lane width; fc2 output padded to this


def starting_state():
    return (0, 0)


def _actor_kernel(idx_ref, w12_ref, b12_ref, w3_ref, b3_ref, o_ref):
    tb = idx_ref.shape[0]

    # Rebuild the one-hot state features on the VPU: exactly 4 contiguous ones
    # starting at flat index row*12 + col*4.
    idx = idx_ref[...]                                             # (tb, 1) int32
    lanes = jax.lax.broadcasted_iota(jnp.int32, (tb, INPUT_DIM), 1)
    onehot = jnp.where((lanes >= idx) & (lanes < idx + 4), 1.0, 0.0)  # (tb, 36) f32

    # Fused fc1 + fc1_1, then ReLU: (tb,36) @ (36,OUTPUT_DIM) + (1,OUTPUT_DIM)
    h = jnp.dot(onehot, w12_ref[...], preferred_element_type=jnp.float32) + b12_ref[...]
    h = jnp.maximum(h, 0.0)

    # fc2, lane-padded to 128 columns. Padded columns have zero weights and a
    # -1e30 bias, so exp() underflows to 0 and they contribute nothing.
    logits = jnp.dot(h, w3_ref[...], preferred_element_type=jnp.float32) + b3_ref[...]

    # Numerically stable softmax over the 128-lane row (only first 4 are live).
    m = jnp.max(logits, axis=-1, keepdims=True)
    e = jnp.exp(logits - m)
    denom = jnp.sum(e, axis=-1, keepdims=True)
    o_ref[...] = e * pl.reciprocal(denom, approx=True)


def prepare_fused_params(p):
    """Fold fc1 into fc1_1 and lane-pad fc2 (done once, outside the kernel)."""
    w12 = p["w1"] @ p["w2"]                      # (36, OUTPUT_DIM)
    b12 = p["b1"] @ p["w2"] + p["b2"]            # (1, OUTPUT_DIM)
    w3p = jnp.zeros((OUTPUT_DIM, LANE), jnp.float32).at[:, :N_ACTIONS].set(p["w3"])
    b3p = jnp.full((1, LANE), -1e30, jnp.float32).at[:, :N_ACTIONS].set(p["b3"])
    return {"w12": w12, "b12": b12, "w3p": w3p, "b3p": b3p}


def actor_forward_batched(idx, fused, *, tile_b=128):
    """idx: (B,) int32 flat one-hot start indices (row*12 + col*4). Returns (B, 4)."""
    idx = jnp.asarray(idx, jnp.int32).reshape(-1)
    b = idx.shape[0]
    bp = ((b + tile_b - 1) // tile_b) * tile_b
    if bp != b:
        idx = jnp.pad(idx, (0, bp - b))          # pad with a valid dummy state
    idx2d = idx.reshape(bp, 1)

    out = pl.pallas_call(
        _actor_kernel,
        out_shape=jax.ShapeDtypeStruct((bp, LANE), jnp.float32),
        grid=(bp // tile_b,),
        in_specs=[
            pl.BlockSpec((tile_b, 1), lambda i: (i, 0)),            # state indices
            pl.BlockSpec((INPUT_DIM, OUTPUT_DIM), lambda i: (0, 0)),  # fused W12
            pl.BlockSpec((1, OUTPUT_DIM), lambda i: (0, 0)),          # fused b12
            pl.BlockSpec((OUTPUT_DIM, LANE), lambda i: (0, 0)),       # padded W3
            pl.BlockSpec((1, LANE), lambda i: (0, 0)),                # padded b3
        ],
        out_specs=pl.BlockSpec((tile_b, LANE), lambda i: (i, 0)),
        compiler_params=pltpu.CompilerParams(
            dimension_semantics=("parallel",)),
    )(idx2d, fused["w12"], fused["b12"], fused["w3p"], fused["b3p"])

    return out[:b, :N_ACTIONS]


def actor_forward(s, fused):
    """Single-state convenience path matching the original module's forward(s)."""
    row, col = s
    idx = jnp.array([row * 12 + col * 4], dtype=jnp.int32)
    return actor_forward_batched(idx, fused, tile_b=8)[0]


def make_state_features(row, col):
    """Equivalent of the PyTorch x(s) helper: zeros(3,3,4), [row,col,:]=1, flatten."""
    template = jnp.zeros((3, 3, 4), dtype=jnp.float32)
    template = template.at[row, col].set(1.0)
    return template.reshape(-1)


def init_params(key):
    """Deterministic synthetic init (uniform(-1/sqrt(fan_in), 1/sqrt(fan_in)) like nn.Linear)."""
    ks = jax.random.split(key, 6)

    def lin(kw, kb, fan_in, fan_out):
        bound = 1.0 / jnp.sqrt(float(fan_in))
        w = jax.random.uniform(kw, (fan_in, fan_out), jnp.float32, -bound, bound)
        b = jax.random.uniform(kb, (1, fan_out), jnp.float32, -bound, bound)
        return w, b

    w1, b1 = lin(ks[0], ks[1], INPUT_DIM, HIDDEN)
    w2, b2 = lin(ks[2], ks[3], HIDDEN, OUTPUT_DIM)
    w3, b3 = lin(ks[4], ks[5], OUTPUT_DIM, N_ACTIONS)
    return {"w1": w1, "b1": b1, "w2": w2, "b2": b2, "w3": w3, "b3": b3}


def reference_forward(x_batch, p):
    """Pure-JAX reference with the ORIGINAL (unfused) layer structure. x_batch: (B, 36)."""
    h1 = x_batch @ p["w1"] + p["b1"]
    h2 = jnp.maximum(h1 @ p["w2"] + p["b2"], 0.0)
    logits = h2 @ p["w3"] + p["b3"]
    return jax.nn.softmax(logits, axis=-1)


if __name__ == "__main__":
    key = jax.random.PRNGKey(0)
    params = init_params(key)
    fused = prepare_fused_params(params)

    # Batched forward over 256 states cycling through the 3x3 grid (grid of 2 tiles).
    B = 256
    rows = jnp.arange(B, dtype=jnp.int32) % 3
    cols = (jnp.arange(B, dtype=jnp.int32) // 3) % 3
    idx = rows * 12 + cols * 4

    probs = actor_forward_batched(idx, fused, tile_b=128)
    probs = jax.block_until_ready(probs)

    # Reference: build the one-hot batch in plain JAX and run the unfused layers.
    lane = jnp.arange(INPUT_DIM)[None, :]
    x_onehot = ((lane >= idx[:, None]) & (lane < idx[:, None] + 4)).astype(jnp.float32)
    ref = reference_forward(x_onehot, params)

    assert probs.shape == (B, N_ACTIONS)
    assert jnp.allclose(jnp.sum(probs, axis=-1), 1.0, atol=2e-3)
    assert jnp.allclose(probs, ref, atol=2e-3), (probs[:2], ref[:2])

    # Single-state path (original module semantics, starting_state() == (0, 0)).
    s = starting_state()
    p0 = jax.block_until_ready(actor_forward(s, fused))
    ref0 = reference_forward(make_state_features(*s)[None, :], params)[0]
    assert p0.shape == (N_ACTIONS,)
    assert jnp.allclose(p0, ref0, atol=2e-3), (p0, ref0)

    print("KERNEL_OK")
</pallas_src>

<mosaic_0001>
module attributes {stable_mosaic.version = 11 : i64} {
  func.func @_actor_kernel(%arg0: i32, %arg1: memref<128x1xi32, #tpu.memory_space<vmem>>, %arg2: memref<36x32xf32, #tpu.memory_space<vmem>>, %arg3: memref<1x32xf32, #tpu.memory_space<vmem>>, %arg4: memref<32x128xf32, #tpu.memory_space<vmem>>, %arg5: memref<1x128xf32, #tpu.memory_space<vmem>>, %arg6: memref<128x128xf32, #tpu.memory_space<vmem>>) attributes {dimension_semantics = [#tpu.dimension_semantics<parallel>], iteration_bounds = array<i64: 2>, scalar_prefetch = 0 : i64, scratch_operands = 0 : i64, tpu.core_type = #tpu.core_type<tc>, window_params = [{transform_indices = @transform_0, window_bounds = array<i64: 128, 1>}, {pipeline_mode = #tpu.pipeline_mode<synchronous>, transform_indices = @transform_1, window_bounds = array<i64: 36, 32>}, {pipeline_mode = #tpu.pipeline_mode<synchronous>, transform_indices = @transform_2, window_bounds = array<i64: 1, 32>}, {pipeline_mode = #tpu.pipeline_mode<synchronous>, transform_indices = @transform_3, window_bounds = array<i64: 32, 128>}, {pipeline_mode = #tpu.pipeline_mode<synchronous>, transform_indices = @transform_4, window_bounds = array<i64: 1, 128>}, {transform_indices = @transform_5, window_bounds = array<i64: 128, 128>}]} {
    %c0 = arith.constant 0 : index
    %c0_0 = arith.constant 0 : index
    %0 = vector.load %arg1[%c0, %c0_0] : memref<128x1xi32, #tpu.memory_space<vmem>>, vector<128x1xi32>
    %1 = tpu.iota {dimensions = array<i32: 1>} : vector<128x36xi32>
    %2 = vector.broadcast %0 : vector<128x1xi32> to vector<128x36xi32>
    %3 = arith.cmpi sge, %1, %2 : vector<128x36xi32>
    %c4_i32 = arith.constant 4 : i32
    %4 = vector.broadcast %c4_i32 : i32 to vector<128x1xi32>
    %5 = arith.addi %0, %4 : vector<128x1xi32>
    %6 = vector.broadcast %5 : vector<128x1xi32> to vector<128x36xi32>
    %7 = arith.cmpi slt, %1, %6 : vector<128x36xi32>
    %8 = arith.andi %3, %7 : vector<128x36xi1>
    %cst = arith.constant 1.000000e+00 : f32
    %cst_1 = arith.constant 0.000000e+00 : f32
    %9 = vector.broadcast %cst : f32 to vector<128x36xf32>
    %10 = vector.broadcast %cst_1 : f32 to vector<128x36xf32>
    %11 = arith.select %8, %9, %10 : vector<128x36xi1>, vector<128x36xf32>
    %c0_2 = arith.constant 0 : index
    %c0_3 = arith.constant 0 : index
    %12 = vector.load %arg2[%c0_2, %c0_3] : memref<36x32xf32, #tpu.memory_space<vmem>>, vector<36x32xf32>
    %cst_4 = arith.constant dense<0.000000e+00> : vector<128x32xf32>
    %13 = tpu.matmul %11, %12, %cst_4 {dimension_numbers = #tpu.dot_dimension_numbers<[1], [0], [0], [1], [0, 0, 1, 1], [], []>} : vector<128x36xf32>, vector<36x32xf32>, vector<128x32xf32> -> vector<128x32xf32>
    %c0_5 = arith.constant 0 : index
    %c0_6 = arith.constant 0 : index
    %14 = vector.load %arg3[%c0_5, %c0_6] : memref<1x32xf32, #tpu.memory_space<vmem>>, vector<1x32xf32>
    %15 = vector.broadcast %14 : vector<1x32xf32> to vector<128x32xf32>
    %16 = arith.addf %13, %15 : vector<128x32xf32>
    %cst_7 = arith.constant 0.000000e+00 : f32
    %17 = vector.broadcast %cst_7 : f32 to vector<128x32xf32>
    %18 = arith.maximumf %16, %17 : vector<128x32xf32>
    %c0_8 = arith.constant 0 : index
    %c0_9 = arith.constant 0 : index
    %19 = vector.load %arg4[%c0_8, %c0_9] : memref<32x128xf32, #tpu.memory_space<vmem>>, vector<32x128xf32>
    %cst_10 = arith.constant dense<0.000000e+00> : vector<128x128xf32>
    %20 = tpu.matmul %18, %19, %cst_10 {dimension_numbers = #tpu.dot_dimension_numbers<[1], [0], [0], [1], [0, 0, 1, 1], [], []>} : vector<128x32xf32>, vector<32x128xf32>, vector<128x128xf32> -> vector<128x128xf32>
    %c0_11 = arith.constant 0 : index
    %c0_12 = arith.constant 0 : index
    %21 = vector.load %arg5[%c0_11, %c0_12] : memref<1x128xf32, #tpu.memory_space<vmem>>, vector<1x128xf32>
    %22 = vector.broadcast %21 : vector<1x128xf32> to vector<128x128xf32>
    %23 = arith.addf %20, %22 : vector<128x128xf32>
    %cst_13 = arith.constant dense<0xFF800000> : vector<128xf32>
    %24 = vector.multi_reduction <maximumf>, %23, %cst_13 [1] : vector<128x128xf32> to vector<128xf32>
    %25 = vector.shape_cast %24 : vector<128xf32> to vector<128x1xf32>
    %26 = vector.broadcast %25 : vector<128x1xf32> to vector<128x128xf32>
    %27 = arith.subf %23, %26 : vector<128x128xf32>
    %28 = math.exp %27 : vector<128x128xf32>
    %cst_14 = arith.constant dense<0.000000e+00> : vector<128xf32>
    %29 = vector.multi_reduction <add>, %28, %cst_14 [1] : vector<128x128xf32> to vector<128xf32>
    %30 = vector.shape_cast %29 : vector<128xf32> to vector<128x1xf32>
    %31 = tpu.reciprocal %30 {approx = true} : vector<128x1xf32> -> vector<128x1xf32>
    %32 = vector.broadcast %31 : vector<128x1xf32> to vector<128x128xf32>
    %33 = arith.mulf %28, %32 : vector<128x128xf32>
    %c0_15 = arith.constant 0 : index
    %c0_16 = arith.constant 0 : index
    %34 = vector.load %arg6[%c0_15, %c0_16] : memref<128x128xf32, #tpu.memory_space<vmem>>, vector<128x128xf32>
    tpu.vector_store %arg6[%c0_15, %c0_16], %33 {strides = array<i32>} : memref<128x128xf32, #tpu.memory_space<vmem>>, vector<128x128xf32>,
    return
  }
  func.func @transform_0(%arg0: i32) -> (i32, i32) {
    %c0_i32 = arith.constant 0 : i32
    %c0_i32_0 = arith.constant 0 : i32
    return %arg0, %c0_i32 : i32, i32
  }
  func.func @transform_1(%arg0: i32) -> (i32, i32) {
    %c0_i32 = arith.constant 0 : i32
    %c0_i32_0 = arith.constant 0 : i32
    %c0_i32_1 = arith.constant 0 : i32
    return %c0_i32, %c0_i32_0 : i32, i32
  }
  func.func @transform_2(%arg0: i32) -> (i32, i32) {
    %c0_i32 = arith.constant 0 : i32
    %c0_i32_0 = arith.constant 0 : i32
    %c0_i32_1 = arith.constant 0 : i32
    return %c0_i32, %c0_i32_0 : i32, i32
  }
  func.func @transform_3(%arg0: i32) -> (i32, i32) {
    %c0_i32 = arith.constant 0 : i32
    %c0_i32_0 = arith.constant 0 : i32
    %c0_i32_1 = arith.constant 0 : i32
    return %c0_i32, %c0_i32_0 : i32, i32
  }
  func.func @transform_4(%arg0: i32) -> (i32, i32) {
    %c0_i32 = arith.constant 0 : i32
    %c0_i32_0 = arith.constant 0 : i32
    %c0_i32_1 = arith.constant 0 : i32
    return %c0_i32, %c0_i32_0 : i32, i32
  }
  func.func @transform_5(%arg0: i32) -> (i32, i32) {
    %c0_i32 = arith.constant 0 : i32
    %c0_i32_0 = arith.constant 0 : i32
    return %arg0, %c0_i32 : i32, i32
  }
}

</mosaic_0001>

<llo_original>
// kernel: tpu_custom_call.1
$region0: #{tpu_custom_call.1}
  #allocation0 [shape = 'u32[]', space=smem, size = 0x4, offset = 0x4, fixed_abs, tag = 'smem constant byte address 0x4 - core index']
  #allocation1 [shape = 'u32[144,128]{1,0:T(1,128)}', space=vmem, size = 0x12000, scoped, tag = 'internal scratch']
  %s0 = inlined_call_operand.vmem [shape: s32[256,1], index: 0, kind: input, shape index: {}]
  %s1 = inlined_call_operand.vmem [shape: f32[36,32], index: 1, kind: input, shape index: {}]
  %s2 = inlined_call_operand.vmem [shape: f32[1,32], index: 2, kind: input, shape index: {}]
  %s3 = inlined_call_operand.vmem [shape: f32[32,128], index: 3, kind: input, shape index: {}]
  %s4 = inlined_call_operand.vmem [shape: f32[1,128], index: 4, kind: input, shape index: {}]
  %s5 = inlined_call_operand.hbm [shape: f32[256,128], index: 5, kind: output, shape index: {}]
  %s6 = sld [smem:[#allocation0]]
  $region53: #{tpu_custom_call.1} parent=0
    _
  %s8 = ssub.s32 1, %s6
  %s9 = scalar_select 0, %s8, %s6
  $region1: #{tpu_custom_call.1} parent=0
    #allocation2 [shape = 'u8[131072]{0}', space=vmem, size = 0x20000, scoped, tag = 'output window, operand 0']
    #allocation3 [shape = 's32[2]{0}', space=sflag, size = 0x8, scoped, tag = 'scoped memory for tpu_custom_call.1']
    %10 = vsyncpa [#allocation3], 0
    %s11 = scalar_lea.sflag [#allocation3], 1
    %12 = vsyncpa %s11, 0
    loop: start=0, step=1, limit=4
    $region2: #{tpu_custom_call.1} parent=1 // loop_pre_header
      _
    $region3: #{tpu_custom_call.1} parent=1 // loop_header
      %s14 = sphi 0, %s18
      %p15 = scmp.ge.s32.totalorder %s14, 4
      %s24 = sphi 0, %s26
      %s27 = sphi 0, %s24
      %s28 = sphi 0, %s27
      %s44 = sphi 0, %s28
      %s48 = sphi 0, %s48
      %s50 = sphi 0, %s48
      %s51 = sphi 0, %s50
      %s65 = sphi 0, %s51
      %s69 = sphi 0, %s69
      %s71 = sphi 0, %s69
      %s72 = sphi 0, %s71
      %s86 = sphi 0, %s72
      %s90 = sphi 0, %s90
      %s92 = sphi 0, %s90
      %s93 = sphi 0, %s92
      %s107 = sphi 0, %s93
      %s111 = sphi 0, %s111
      %s113 = sphi 0, %s111
      %s114 = sphi 0, %s113
      %s128 = sphi 0, %s114
      %s134 = sphi 0, %s136
      %s137 = sphi 0, %s134
      %s138 = sphi 0, %s137
      %s154 = sphi 0, %s138
    $region4: #{tpu_custom_call.1} parent=1 // loop_header_branch
      %17 = sbr.rel (%p15) target = $region8
    $region5: #{tpu_custom_call.1} parent=1 // loop_body
      %s19 = ssub.s32 %s14, 1
      %s20 = ssub.s32 %s14, 2
      %s21 = sadd.s32 %s14, 1
      %s22 = ssub.s32 %s14, %s21
      %p23 = scmp.eq.s32.totalorder %s22, 0
      %s25 = sadd.s32 %s24, 1
      %s26 = scalar_select %p23, %s24, %s25
      %p29 = pneg %p23
      %p30 = scmp.eq.s32.totalorder %s14, 1
      %p31 = por %p29, %p30
      %p32 = scmp.ne.s32.totalorder %s24, %s27
      %p33 = scmp.eq.s32.totalorder %s14, 0
      %p34 = por %p32, %p33
      %p35 = scmp.ne.s32.totalorder %s24, %s27
      %p36 = scmp.eq.s32.totalorder %s19, 1
      %p37 = por %p35, %p36
      %p38 = scmp.ne.s32.totalorder %s27, %s28
      %p39 = scmp.eq.s32.totalorder %s19, 0
      %p40 = por %p38, %p39
      %p41 = scmp.ne.s32.totalorder %s27, %s28
      %p42 = scmp.eq.s32.totalorder %s20, 1
      %p43 = por %p41, %p42
      %p45 = scmp.ne.s32.totalorder %s28, %s44
      %p46 = scmp.eq.s32.totalorder %s20, 0
      %p47 = por %p45, %p46
      %s49 = sadd.s32 %s48, 1
      %p52 = scmp.eq.s32.totalorder %s14, 1
      %p53 = scmp.ne.s32.totalorder %s48, %s50
      %p54 = scmp.eq.s32.totalorder %s14, 0
      %p55 = por %p53, %p54
      %p56 = scmp.ne.s32.totalorder %s48, %s50
      %p57 = scmp.eq.s32.totalorder %s19, 1
      %p58 = por %p56, %p57
      %p59 = scmp.ne.s32.totalorder %s50, %s51
      %p60 = scmp.eq.s32.totalorder %s19, 0
      %p61 = por %p59, %p60
      %p62 = scmp.ne.s32.totalorder %s50, %s51
      %p63 = scmp.eq.s32.totalorder %s20, 1
      %p64 = por %p62, %p63
      %p66 = scmp.ne.s32.totalorder %s51, %s65
      %p67 = scmp.eq.s32.totalorder %s20, 0
      %p68 = por %p66, %p67
      %s70 = sadd.s32 %s69, 1
      %p73 = scmp.eq.s32.totalorder %s14, 1
      %p74 = scmp.ne.s32.totalorder %s69, %s71
      %p75 = scmp.eq.s32.totalorder %s14, 0
      %p76 = por %p74, %p75
      %p77 = scmp.ne.s32.totalorder %s69, %s71
      %p78 = scmp.eq.s32.totalorder %s19, 1
      %p79 = por %p77, %p78
      %p80 = scmp.ne.s32.totalorder %s71, %s72
      %p81 = scmp.eq.s32.totalorder %s19, 0
      %p82 = por %p80, %p81
      %p83 = scmp.ne.s32.totalorder %s71, %s72
      %p84 = scmp.eq.s32.totalorder %s20, 1
      %p85 = por %p83, %p84
      %p87 = scmp.ne.s32.totalorder %s72, %s86
      %p88 = scmp.eq.s32.totalorder %s20, 0
      %p89 = por %p87, %p88
      %s91 = sadd.s32 %s90, 1
      %p94 = scmp.eq.s32.totalorder %s14, 1
      %p95 = scmp.ne.s32.totalorder %s90, %s92
      %p96 = scmp.eq.s32.totalorder %s14, 0
      %p97 = por %p95, %p96
      %p98 = scmp.ne.s32.totalorder %s90, %s92
      %p99 = scmp.eq.s32.totalorder %s19, 1
      %p100 = por %p98, %p99
      %p101 = scmp.ne.s32.totalorder %s92, %s93
      %p102 = scmp.eq.s32.totalorder %s19, 0
      %p103 = por %p101, %p102
      %p104 = scmp.ne.s32.totalorder %s92, %s93
      %p105 = scmp.eq.s32.totalorder %s20, 1
      %p106 = por %p104, %p105
      %p108 = scmp.ne.s32.totalorder %s93, %s107
      %p109 = scmp.eq.s32.totalorder %s20, 0
      %p110 = por %p108, %p109
      %s112 = sadd.s32 %s111, 1
      %p115 = scmp.eq.s32.totalorder %s14, 1
      %p116 = scmp.ne.s32.totalorder %s111, %s113
      %p117 = scmp.eq.s32.totalorder %s14, 0
      %p118 = por %p116, %p117
      %p119 = scmp.ne.s32.totalorder %s111, %s113
      %p120 = scmp.eq.s32.totalorder %s19, 1
      %p121 = por %p119, %p120
      %p122 = scmp.ne.s32.totalorder %s113, %s114
      %p123 = scmp.eq.s32.totalorder %s19, 0
      %p124 = por %p122, %p123
      %p125 = scmp.ne.s32.totalorder %s113, %s114
      %p126 = scmp.eq.s32.totalorder %s20, 1
      %p127 = por %p125, %p126
      %p129 = scmp.ne.s32.totalorder %s114, %s128
      %p130 = scmp.eq.s32.totalorder %s20, 0
      %p131 = por %p129, %p130
      %s132 = ssub.s32 %s14, %s21
      %p133 = scmp.eq.s32.totalorder %s132, 0
      %s135 = sadd.s32 %s134, 1
      %s136 = scalar_select %p133, %s134, %s135
      %p139 = pneg %p133
      %p140 = scmp.eq.s32.totalorder %s14, 1
      %p141 = por %p139, %p140
      %p142 = scmp.ne.s32.totalorder %s134, %s137
      %p143 = scmp.eq.s32.totalorder %s14, 0
      %p144 = por %p142, %p143
      %p145 = scmp.ne.s32.totalorder %s134, %s137
      %p146 = scmp.eq.s32.totalorder %s19, 1
      %p147 = por %p145, %p146
      %p148 = scmp.ne.s32.totalorder %s137, %s138
      %p149 = scmp.eq.s32.totalorder %s19, 0
      %p150 = por %p148, %p149
      %p151 = scmp.ne.s32.totalorder %s137, %s138
      %p152 = scmp.eq.s32.totalorder %s20, 1
      %p153 = por %p151, %p152
      %p155 = scmp.ne.s32.totalorder %s138, %s154
      %p156 = scmp.eq.s32.totalorder %s20, 0
      %p157 = por %p155, %p156
      %p158 = scmp.le.s32.totalorder 1, %s14
      %p159 = scmp.lt.s32.totalorder %s14, 3
      %p160 = pnand %p158, %p159
      %p161 = pneg %p160
      // Predicated region
      $region9: #{tpu_custom_call.1} parent=5 // pred_check
        _
      $region10: #{tpu_custom_call.1} parent=5 // pred_check_branch
        %163 = sbr.rel (%p160) target = $region12
      $region11: #{tpu_custom_call.1} parent=5 // pred_region
        %s164 = ssub.s32 %s14, 1
        // Predicated region
        $region13: #{tpu_custom_call.1} parent=11 // pred_check
          %p165 = pneg %p61
        $region14: #{tpu_custom_call.1} parent=11 // pred_check_branch
          %167 = sbr.rel (%p165) target = $region16
        $region15: #{tpu_custom_call.1} parent=11 // pred_region
          _
        $region16: #{tpu_custom_call.1} parent=11 // pred_fallthru
          _
        // Predicated region
        $region17: #{tpu_custom_call.1} parent=11 // pred_check
          %p168 = pneg %p82
        $region18: #{tpu_custom_call.1} parent=11 // pred_check_branch
          %170 = sbr.rel (%p168) target = $region20
        $region19: #{tpu_custom_call.1} parent=11 // pred_region
          _
        $region20: #{tpu_custom_call.1} parent=11 // pred_fallthru
          _
        // Predicated region
        $region21: #{tpu_custom_call.1} parent=11 // pred_check
          %p171 = pneg %p103
        $region22: #{tpu_custom_call.1} parent=11 // pred_check_branch
          %173 = sbr.rel (%p171) target = $region24
        $region23: #{tpu_custom_call.1} parent=11 // pred_region
          _
        $region24: #{tpu_custom_call.1} parent=11 // pred_fallthru
          _
        // Predicated region
        $region25: #{tpu_custom_call.1} parent=11 // pred_check
          %p174 = pneg %p124
        $region26: #{tpu_custom_call.1} parent=11 // pred_check_branch
          %176 = sbr.rel (%p174) target = $region28
        $region27: #{tpu_custom_call.1} parent=11 // pred_region
          _
        $region28: #{tpu_custom_call.1} parent=11 // pred_fallthru
          _
      $region12: #{tpu_custom_call.1} parent=5 // pred_fallthru
        _
      %p177 = scmp.lt.s32.totalorder %s14, 2
      // Predicated region
      $region29: #{tpu_custom_call.1} parent=5 // pred_check
        %p178 = pneg %p177
      $region30: #{tpu_custom_call.1} parent=5 // pred_check_branch
        %180 = sbr.rel (%p178) target = $region32
      $region31: #{tpu_custom_call.1} parent=5 // pred_region
        // Predicated region
        $region33: #{tpu_custom_call.1} parent=31 // pred_check
          %p181 = pneg %p34
        $region34: #{tpu_custom_call.1} parent=31 // pred_check_branch
          %183 = sbr.rel (%p181) target = $region36
        $region35: #{tpu_custom_call.1} parent=31 // pred_region
          %s184 = smul.u32 16, %s14
          %p185 = scmp.lt.s32.totalorder %s184, 31
          %s186 = scalar_select %p185, %s184, 31
          %s187 = smul.addr %s186, 8
          %s188 = scalar_lea.vmem %s0, %s187
          %s189 = smul.u32 16, %s14
        $region36: #{tpu_custom_call.1} parent=31 // pred_fallthru
          _
      $region32: #{tpu_custom_call.1} parent=5 // pred_fallthru
        _
      %p190 = scmp.le.s32.totalorder 1, %s14
      %p191 = scmp.lt.s32.totalorder %s14, 3
      %p192 = pnand %p190, %p191
      %p193 = pneg %p192
      // Predicated region
      $region37: #{tpu_custom_call.1} parent=5 // pred_check
        _
      $region38: #{tpu_custom_call.1} parent=5 // pred_check_branch
        %195 = sbr.rel (%p192) target = $region40
      $region39: #{tpu_custom_call.1} parent=5 // pred_region
        %s196 = ssub.s32 %s14, 1
        %s197 = smul.u32 16, %s19
        %p198 = scmp.lt.s32.totalorder %s197, 31
        %s199 = scalar_select %p198, %s197, 31
        %s200 = smul.addr %s199, 8
        %s201 = scalar_lea.vmem %s0, %s200
        %p202 = pneg %p40
        %p203 = pneg %p37
        %p204 = pneg %p61
        %p205 = pneg %p58
        %p206 = pneg %p82
        %p207 = pneg %p79
        %p208 = pneg %p103
        %p209 = pneg %p100
        %p210 = pneg %p124
        %p211 = pneg %p121
        %p212 = pneg %p150
        %p213 = pneg %p147
        %s214 = sand.u32 %s137, 1
        %s215 = scalar_lea.sflag [#allocation3], %s214
        %s216 = sand.u32 %s137, 1
        %s217 = smul.addr %s216, 128
        %s218 = scalar_lea.vmem [#allocation2], %s217
        %s219 = smul.u32 16, %s19
        %p220 = scmp.lt.s32.totalorder %s219, 31
        %s221 = scalar_select %p220, %s219, 31
        %s222 = smul.addr %s221, 8
        %s223 = scalar_lea.vmem %s0, %s222
        %s224 = smul.u32 16, %s19
        %s225 = smul.u32 16, %s19
        %v226 = vld [vmem:[%s223] sm:$0xff]
        %v227 = vld [vmem:[%s223 + $0x8] sm:$0xff]
        %v228 = vld [vmem:[%s223 + $0x10] sm:$0xff]
        %v229 = vld [vmem:[%s223 + $0x18] sm:$0xff]
        %v230 = vld [vmem:[%s223 + $0x20] sm:$0xff]
        %v231 = vld [vmem:[%s223 + $0x28] sm:$0xff]
        %v232 = vld [vmem:[%s223 + $0x30] sm:$0xff]
        %v233 = vld [vmem:[%s223 + $0x38] sm:$0xff]
        %v234 = vld [vmem:[%s223 + $0x40] sm:$0xff]
        %v235 = vld [vmem:[%s223 + $0x48] sm:$0xff]
        %v236 = vld [vmem:[%s223 + $0x50] sm:$0xff]
        %v237 = vld [vmem:[%s223 + $0x58] sm:$0xff]
        %v238 = vld [vmem:[%s223 + $0x60] sm:$0xff]
        %v239 = vld [vmem:[%s223 + $0x68] sm:$0xff]
        %v240 = vld [vmem:[%s223 + $0x70] sm:$0xff]
        %v241 = vld [vmem:[%s223 + $0x78] sm:$0xff]
        %v242 = vlaneseq
        %v243 = vand.u32 %v242, 127
        %244 = vset.pattern.permute.xlu0 0
        %245 = vperm.xlu0 %244, %v226
        %v246 = vpop.permute.xlu0 %245
        %247 = vset.pattern.permute.xlu0 0
        %248 = vperm.xlu0 %247, %v227
        %v249 = vpop.permute.xlu0 %248
        %250 = vset.pattern.permute.xlu0 0
        %251 = vperm.xlu0 %250, %v228
        %v252 = vpop.permute.xlu0 %251
        %253 = vset.pattern.permute.xlu0 0
        %254 = vperm.xlu0 %253, %v229
        %v255 = vpop.permute.xlu0 %254
        %256 = vset.pattern.permute.xlu0 0
        %257 = vperm.xlu0 %256, %v230
        %v258 = vpop.permute.xlu0 %257
        %259 = vset.pattern.permute.xlu0 0
        %260 = vperm.xlu0 %259, %v231
        %v261 = vpop.permute.xlu0 %260
        %262 = vset.pattern.permute.xlu0 0
        %263 = vperm.xlu0 %262, %v232
        %v264 = vpop.permute.xlu0 %263
        %265 = vset.pattern.permute.xlu0 0
        %266 = vperm.xlu0 %265, %v233
        %v267 = vpop.permute.xlu0 %266
        %268 = vset.pattern.permute.xlu0 0
        %269 = vperm.xlu0 %268, %v234
        %v270 = vpop.permute.xlu0 %269
        %271 = vset.pattern.permute.xlu0 0
        %272 = vperm.xlu0 %271, %v235
        %v273 = vpop.permute.xlu0 %272
        %274 = vset.pattern.permute.xlu0 0
        %275 = vperm.xlu0 %274, %v236
        %v276 = vpop.permute.xlu0 %275
        %277 = vset.pattern.permute.xlu0 0
        %278 = vperm.xlu0 %277, %v237
        %v279 = vpop.permute.xlu0 %278
        %280 = vset.pattern.permute.xlu0 0
        %281 = vperm.xlu0 %280, %v238
        %v282 = vpop.permute.xlu0 %281
        %283 = vset.pattern.permute.xlu0 0
        %284 = vperm.xlu0 %283, %v239
        %v285 = vpop.permute.xlu0 %284
        %286 = vset.pattern.permute.xlu0 0
        %287 = vperm.xlu0 %286, %v240
        %v288 = vpop.permute.xlu0 %287
        %289 = vset.pattern.permute.xlu0 0
        %290 = vperm.xlu0 %289, %v241
        %v291 = vpop.permute.xlu0 %290
        %vm292 = vcmp.ge.s32.totalorder %v243, %v246
        %vm293 = vcmp.ge.s32.totalorder %v243, %v249
        %vm294 = vcmp.ge.s32.totalorder %v243, %v252
        %vm295 = vcmp.ge.s32.totalorder %v243, %v255
        %vm296 = vcmp.ge.s32.totalorder %v243, %v258
        %vm297 = vcmp.ge.s32.totalorder %v243, %v261
        %vm298 = vcmp.ge.s32.totalorder %v243, %v264
        %vm299 = vcmp.ge.s32.totalorder %v243, %v267
        %vm300 = vcmp.ge.s32.totalorder %v243, %v270
        %vm301 = vcmp.ge.s32.totalorder %v243, %v273
        %vm302 = vcmp.ge.s32.totalorder %v243, %v276
        %vm303 = vcmp.ge.s32.totalorder %v243, %v279
        %vm304 = vcmp.ge.s32.totalorder %v243, %v282
        %vm305 = vcmp.ge.s32.totalorder %v243, %v285
        %vm306 = vcmp.ge.s32.totalorder %v243, %v288
        %vm307 = vcmp.ge.s32.totalorder %v243, %v291
        %v308 = vadd.s32 %v226, 4
        %v309 = vadd.s32 %v227, 4
        %v310 = vadd.s32 %v228, 4
        %v311 = vadd.s32 %v229, 4
        %v312 = vadd.s32 %v230, 4
        %v313 = vadd.s32 %v231, 4
        %v314 = vadd.s32 %v232, 4
        %v315 = vadd.s32 %v233, 4
        %v316 = vadd.s32 %v234, 4
        %v317 = vadd.s32 %v235, 4
        %v318 = vadd.s32 %v236, 4
        %v319 = vadd.s32 %v237, 4
        %v320 = vadd.s32 %v238, 4
        %v321 = vadd.s32 %v239, 4
        %v322 = vadd.s32 %v240, 4
        %v323 = vadd.s32 %v241, 4
        %324 = vset.pattern.permute.xlu0 0
        %325 = vperm.xlu0 %324, %v308
        %v326 = vpop.permute.xlu0 %325
        %327 = vset.pattern.permute.xlu0 0
        %328 = vperm.xlu0 %327, %v309
        %v329 = vpop.permute.xlu0 %328
        %330 = vset.pattern.permute.xlu0 0
        %331 = vperm.xlu0 %330, %v310
        %v332 = vpop.permute.xlu0 %331
        %333 = vset.pattern.permute.xlu0 0
        %334 = vperm.xlu0 %333, %v311
        %v335 = vpop.permute.xlu0 %334
        %336 = vset.pattern.permute.xlu0 0
        %337 = vperm.xlu0 %336, %v312
        %v338 = vpop.permute.xlu0 %337
        %339 = vset.pattern.permute.xlu0 0
        %340 = vperm.xlu0 %339, %v313
        %v341 = vpop.permute.xlu0 %340
        %342 = vset.pattern.permute.xlu0 0
        %343 = vperm.xlu0 %342, %v314
        %v344 = vpop.permute.xlu0 %343
        %345 = vset.pattern.permute.xlu0 0
        %346 = vperm.xlu0 %345, %v315
        %v347 = vpop.permute.xlu0 %346
        %348 = vset.pattern.permute.xlu0 0
        %349 = vperm.xlu0 %348, %v316
        %v350 = vpop.permute.xlu0 %349
        %351 = vset.pattern.permute.xlu0 0
        %352 = vperm.xlu0 %351, %v317
        %v353 = vpop.permute.xlu0 %352
        %354 = vset.pattern.permute.xlu0 0
        %355 = vperm.xlu0 %354, %v318
        %v356 = vpop.permute.xlu0 %355
        %357 = vset.pattern.permute.xlu0 0
        %358 = vperm.xlu0 %357, %v319
        %v359 = vpop.permute.xlu0 %358
        %360 = vset.pattern.permute.xlu0 0
        %361 = vperm.xlu0 %360, %v320
        %v362 = vpop.permute.xlu0 %361
        %363 = vset.pattern.permute.xlu0 0
        %364 = vperm.xlu0 %363, %v321
        %v365 = vpop.permute.xlu0 %364
        %366 = vset.pattern.permute.xlu0 0
        %367 = vperm.xlu0 %366, %v322
        %v368 = vpop.permute.xlu0 %367
        %369 = vset.pattern.permute.xlu0 0
        %370 = vperm.xlu0 %369, %v323
        %v371 = vpop.permute.xlu0 %370
        %vm372 = vcmp.lt.s32.totalorder %v243, %v326
        %vm373 = vcmp.lt.s32.totalorder %v243, %v329
        %vm374 = vcmp.lt.s32.totalorder %v243, %v332
        %vm375 = vcmp.lt.s32.totalorder %v243, %v335
        %vm376 = vcmp.lt.s32.totalorder %v243, %v338
        %vm377 = vcmp.lt.s32.totalorder %v243, %v341
        %vm378 = vcmp.lt.s32.totalorder %v243, %v344
        %vm379 = vcmp.lt.s32.totalorder %v243, %v347
        %vm380 = vcmp.lt.s32.totalorder %v243, %v350
        %vm381 = vcmp.lt.s32.totalorder %v243, %v353
        %vm382 = vcmp.lt.s32.totalorder %v243, %v356
        %vm383 = vcmp.lt.s32.totalorder %v243, %v359
        %vm384 = vcmp.lt.s32.totalorder %v243, %v362
        %vm385 = vcmp.lt.s32.totalorder %v243, %v365
        %vm386 = vcmp.lt.s32.totalorder %v243, %v368
        %vm387 = vcmp.lt.s32.totalorder %v243, %v371
        %vm388 = vmand %vm292, %vm372
        %vm389 = vmand %vm293, %vm373
        %vm390 = vmand %vm294, %vm374
        %vm391 = vmand %vm295, %vm375
        %vm392 = vmand %vm296, %vm376
        %vm393 = vmand %vm297, %vm377
        %vm394 = vmand %vm298, %vm378
        %vm395 = vmand %vm299, %vm379
        %vm396 = vmand %vm300, %vm380
        %vm397 = vmand %vm301, %vm381
        %vm398 = vmand %vm302, %vm382
        %vm399 = vmand %vm303, %vm383
        %vm400 = vmand %vm304, %vm384
        %vm401 = vmand %vm305, %vm385
        %vm402 = vmand %vm306, %vm386
        %vm403 = vmand %vm307, %vm387
        %v404 = vsel %vm388, 1.0, 0.0
        %v405 = vsel %vm389, 1.0, 0.0
        %v406 = vsel %vm390, 1.0, 0.0
        %v407 = vsel %vm391, 1.0, 0.0
        %v408 = vsel %vm392, 1.0, 0.0
        %v409 = vsel %vm393, 1.0, 0.0
        %v410 = vsel %vm394, 1.0, 0.0
        %v411 = vsel %vm395, 1.0, 0.0
        %v412 = vsel %vm396, 1.0, 0.0
        %v413 = vsel %vm397, 1.0, 0.0
        %v414 = vsel %vm398, 1.0, 0.0
        %v415 = vsel %vm399, 1.0, 0.0
        %v416 = vsel %vm400, 1.0, 0.0
        %v417 = vsel %vm401, 1.0, 0.0
        %v418 = vsel %vm402, 1.0, 0.0
        %v419 = vsel %vm403, 1.0, 0.0
        %v420 = vld [vmem:[%s1] sm:$0xff]
        %v421 = vld [vmem:[%s1 + $0x8] sm:$0xff]
        %v422 = vld [vmem:[%s1 + $0x10] sm:$0xff]
        %v423 = vld [vmem:[%s1 + $0x18] sm:$0xff]
        %v424 = vld [vmem:[%s1 + $0x20] sm:$0xf]
        %v425 = vld [vmem:[%s2] sm:$0x1]
        %v427 = vlaneseq
        %v428 = vshrl.u32 %v427, 7
        %v429 = vsub.s32 0, %v428
        %v430 = vrot.slane %v425, %v429
        %vm432 = vcmask 293888
        %v434 = vsel %vm432, %v404, 0
        %v437 = vsel %vm432, %v405, 0
        %v440 = vsel %vm432, %v406, 0
        %v443 = vsel %vm432, %v407, 0
        %v446 = vsel %vm432, %v408, 0
        %v449 = vsel %vm432, %v409, 0
        %v452 = vsel %vm432, %v410, 0
        %v455 = vsel %vm432, %v411, 0
        %v458 = vsel %vm432, %v412, 0
        %v461 = vsel %vm432, %v413, 0
        %v464 = vsel %vm432, %v414, 0
        %v467 = vsel %vm432, %v415, 0
        %v470 = vsel %vm432, %v416, 0
        %v473 = vsel %vm432, %v417, 0
        %v476 = vsel %vm432, %v418, 0
        %v479 = vsel %vm432, %v419, 0
        %vm481 = vcmask 1043456
        %v483 = vsel %vm481, %v424, 0
        %485 = vmatprep.subr.mxu0 0.0
        %486 = vmatpush1.msra.mxu0 %v420
        %487 = vmatprep.subr.mxu0 0.0
        %488 = vmatpush1.msra.mxu0 %v421
        %489 = vmatprep.subr.mxu0 0.0
        %490 = vmatpush1.msra.mxu0 %v422
        %491 = vmatprep.subr.mxu0 0.0
        %492 = vmatpush1.msra.mxu0 %v423
        %493 = vmatprep.subr.mxu0 0.0
        %494 = vmatpush1.msra.mxu0 %v483
        %495 = vmatprep.subr.mxu0 0.0
        %496 = vmatpush1.msra.mxu0 0.0
        %497 = vmatprep.subr.mxu0 0.0
        %498 = vmatpush1.msra.mxu0 0.0
        %499 = vmatprep.subr.mxu0 0.0
        %500 = vmatpush1.msra.mxu0 0.0
        %501 = vmatprep.subr.mxu0 0.0
        %502 = vmatpush1.msra.mxu0 0.0
        %503 = vmatprep.subr.mxu0 0.0
        %504 = vmatpush1.msra.mxu0 0.0
        %505 = vmatprep.subr.mxu0 0.0
        %506 = vmatpush1.msra.mxu0 0.0
        %507 = vmatprep.subr.mxu0 0.0
        %508 = vmatpush1.msra.mxu0 0.0
        %509 = vmatprep.subr.mxu0 0.0
        %510 = vmatpush1.msra.mxu0 0.0
        %511 = vmatprep.subr.mxu0 0.0
        %512 = vmatpush1.msra.mxu0 0.0
        %513 = vmatprep.subr.mxu0 0.0
        %514 = vmatpush1.msra.mxu0 0.0
        %515 = vmatprep.subr.mxu0 0.0
        %516 = vmatpush1.msra.mxu0 0.0
        %517 = vmatprep.subr.mxu0 0.0
        %518 = vmatpush1.msra.mxu0 0.0
        %519 = vmatprep.subr.mxu0 0.0
        %520 = vmatpush1.msra.mxu0 0.0
        %521 = vmatprep.subr.mxu0 0.0
        %522 = vmatpush1.msra.mxu0 0.0
        %523 = vmatprep.subr.mxu0 0.0
        %524 = vmatpush1.msra.mxu0 0.0
        %525 = vmatprep.subr.mxu0 0.0
        %526 = vmatpush1.msra.mxu0 0.0
        %527 = vmatprep.subr.mxu0 0.0
        %528 = vmatpush1.msra.mxu0 0.0
        %529 = vmatprep.subr.mxu0 0.0
        %530 = vmatpush1.msra.mxu0 0.0
        %531 = vmatprep.subr.mxu0 0.0
        %532 = vmatpush1.msra.mxu0 0.0
        %533 = vmatprep.subr.mxu0 0.0
        %534 = vmatpush1.msra.mxu0 0.0
        %535 = vmatprep.subr.mxu0 0.0
        %536 = vmatpush1.msra.mxu0 0.0
        %537 = vmatprep.subr.mxu0 0.0
        %538 = vmatpush1.msra.mxu0 0.0
        %539 = vmatprep.subr.mxu0 0.0
        %540 = vmatpush1.msra.mxu0 0.0
        %541 = vmatprep.subr.mxu0 0.0
        %542 = vmatpush1.msra.mxu0 0.0
        %543 = vmatprep.subr.mxu0 0.0
        %544 = vmatpush1.msra.mxu0 0.0
        %545 = vmatprep.subr.mxu0 0.0
        %546 = vmatpush1.msra.mxu0 0.0
        %547 = vmatprep.subr.mxu0 0.0
        %548 = vmatpush1.msra.mxu0 0.0
        %549 = vmatprep.mubr.f32.mxu0 0.0
        %550 = vmatmul.mubr.f32.gmra.mrb[0].mxu0 %v434
        %v551 = vpop.f32.mrb[0].mxu0
        %v552 = vadd.f32 %v430, %v551
        %v553 = vpop.f32.mrb[0].mxu0
        %554 = vmatprep.mubr.f32.mxu0 0.0
        %555 = vmatmul.mubr.f32.gmra.mrb[0].mxu0 %v437
        %v556 = vpop.f32.mrb[0].mxu0
        %v557 = vadd.f32 %v430, %v556
        %v558 = vpop.f32.mrb[0].mxu0
        %559 = vmatprep.mubr.f32.mxu0 0.0
        %560 = vmatmul.mubr.f32.gmra.mrb[0].mxu0 %v440
        %v561 = vpop.f32.mrb[0].mxu0
        %v562 = vadd.f32 %v430, %v561
        %v563 = vpop.f32.mrb[0].mxu0
        %564 = vmatprep.mubr.f32.mxu0 0.0
        %565 = vmatmul.mubr.f32.gmra.mrb[0].mxu0 %v443
        %v566 = vpop.f32.mrb[0].mxu0
        %v567 = vadd.f32 %v430, %v566
        %v568 = vpop.f32.mrb[0].mxu0
        %569 = vmatprep.mubr.f32.mxu0 0.0
        %570 = vmatmul.mubr.f32.gmra.mrb[0].mxu0 %v446
        %v571 = vpop.f32.mrb[0].mxu0
        %v572 = vadd.f32 %v430, %v571
        %v573 = vpop.f32.mrb[0].mxu0
        %574 = vmatprep.mubr.f32.mxu0 0.0
        %575 = vmatmul.mubr.f32.gmra.mrb[0].mxu0 %v449
        %v576 = vpop.f32.mrb[0].mxu0
        %v577 = vadd.f32 %v430, %v576
        %v578 = vpop.f32.mrb[0].mxu0
        %579 = vmatprep.mubr.f32.mxu0 0.0
        %580 = vmatmul.mubr.f32.gmra.mrb[0].mxu0 %v452
        %v581 = vpop.f32.mrb[0].mxu0
        %v582 = vadd.f32 %v430, %v581
        %v583 = vpop.f32.mrb[0].mxu0
        %584 = vmatprep.mubr.f32.mxu0 0.0
        %585 = vmatmul.mubr.f32.gmra.mrb[0].mxu0 %v455
        %v586 = vpop.f32.mrb[0].mxu0
        %v587 = vadd.f32 %v430, %v586
        %v588 = vpop.f32.mrb[0].mxu0
        %589 = vmatprep.mubr.f32.mxu0 0.0
        %590 = vmatmul.mubr.f32.gmra.mrb[0].mxu0 %v458
        %v591 = vpop.f32.mrb[0].mxu0
        %v592 = vadd.f32 %v430, %v591
        %v593 = vpop.f32.mrb[0].mxu0
        %594 = vmatprep.mubr.f32.mxu0 0.0
        %595 = vmatmul.mubr.f32.gmra.mrb[0].mxu0 %v461
        %v596 = vpop.f32.mrb[0].mxu0
        %v597 = vadd.f32 %v430, %v596
        %v598 = vpop.f32.mrb[0].mxu0
        %599 = vmatprep.mubr.f32.mxu0 0.0
        %600 = vmatmul.mubr.f32.gmra.mrb[0].mxu0 %v464
        %v601 = vpop.f32.mrb[0].mxu0
        %v602 = vadd.f32 %v430, %v601
        %v603 = vpop.f32.mrb[0].mxu0
        %604 = vmatprep.mubr.f32.mxu0 0.0
        %605 = vmatmul.mubr.f32.gmra.mrb[0].mxu0 %v467
        %v606 = vpop.f32.mrb[0].mxu0
        %v607 = vadd.f32 %v430, %v606
        %v608 = vpop.f32.mrb[0].mxu0
        %609 = vmatprep.mubr.f32.mxu0 0.0
        %610 = vmatmul.mubr.f32.gmra.mrb[0].mxu0 %v470
        %v611 = vpop.f32.mrb[0].mxu0
        %v612 = vadd.f32 %v430, %v611
        %v613 = vpop.f32.mrb[0].mxu0
        %614 = vmatprep.mubr.f32.mxu0 0.0
        %615 = vmatmul.mubr.f32.gmra.mrb[0].mxu0 %v473
        %v616 = vpop.f32.mrb[0].mxu0
        %v617 = vadd.f32 %v430, %v616
        %v618 = vpop.f32.mrb[0].mxu0
        %619 = vmatprep.mubr.f32.mxu0 0.0
        %620 = vmatmul.mubr.f32.gmra.mrb[0].mxu0 %v476
        %v621 = vpop.f32.mrb[0].mxu0
        %v622 = vadd.f32 %v430, %v621
        %v623 = vpop.f32.mrb[0].mxu0
        %624 = vmatprep.mubr.f32.mxu0 0.0
        %625 = vmatmul.mubr.f32.gmra.mrb[0].mxu0 %v479
        %v626 = vpop.f32.mrb[0].mxu0
        %v627 = vadd.f32 %v430, %v626
        %v628 = vpop.f32.mrb[0].mxu0
        %629 = vdwg.mxu0
        %v630 = vmax.f32 %v552, 0.0
        %v631 = vmax.f32 %v557, 0.0
        %v632 = vmax.f32 %v562, 0.0
        %v633 = vmax.f32 %v567, 0.0
        %v634 = vmax.f32 %v572, 0.0
        %v635 = vmax.f32 %v577, 0.0
        %v636 = vmax.f32 %v582, 0.0
        %v637 = vmax.f32 %v587, 0.0
        %v638 = vmax.f32 %v592, 0.0
        %v639 = vmax.f32 %v597, 0.0
        %v640 = vmax.f32 %v602, 0.0
        %v641 = vmax.f32 %v607, 0.0
        %v642 = vmax.f32 %v612, 0.0
        %v643 = vmax.f32 %v617, 0.0
        %v644 = vmax.f32 %v622, 0.0
        %v645 = vmax.f32 %v627, 0.0
        %v646 = vld [vmem:[%s3] sm:$0xff]
        %v647 = vld [vmem:[%s3 + $0x8] sm:$0xff]
        %v648 = vld [vmem:[%s3 + $0x10] sm:$0xff]
        %v649 = vld [vmem:[%s3 + $0x18] sm:$0xff]
        %v650 = vld [vmem:[%s4] sm:$0x1]
        %v652 = vlaneseq
        %v653 = vshrl.u32 %v652, 7
        %v654 = vsub.s32 0, %v653
        %v655 = vrot.slane %v650, %v654
        %vm657 = vcmask 261120
        %v659 = vsel %vm657, %v630, 0
        %v662 = vsel %vm657, %v631, 0
        %v665 = vsel %vm657, %v632, 0
        %v668 = vsel %vm657, %v633, 0
        %v671 = vsel %vm657, %v634, 0
        %v674 = vsel %vm657, %v635, 0
        %v677 = vsel %vm657, %v636, 0
        %v680 = vsel %vm657, %v637, 0
        %v683 = vsel %vm657, %v638, 0
        %v686 = vsel %vm657, %v639, 0
        %v689 = vsel %vm657, %v640, 0
        %v692 = vsel %vm657, %v641, 0
        %v695 = vsel %vm657, %v642, 0
        %v698 = vsel %vm657, %v643, 0
        %v701 = vsel %vm657, %v644, 0
        %v704 = vsel %vm657, %v645, 0
        %706 = vmatprep.subr.mxu0 0.0
        %707 = vmatpush1.msra.mxu0 %v646
        %708 = vmatprep.subr.mxu0 0.0
        %709 = vmatpush1.msra.mxu0 %v647
        %710 = vmatprep.subr.mxu0 0.0
        %711 = vmatpush1.msra.mxu0 %v648
        %712 = vmatprep.subr.mxu0 0.0
        %713 = vmatpush1.msra.mxu0 %v649
        %714 = vmatprep.subr.mxu0 0.0
        %715 = vmatpush1.msra.mxu0 0.0
        %716 = vmatprep.subr.mxu0 0.0
        %717 = vmatpush1.msra.mxu0 0.0
        %718 = vmatprep.subr.mxu0 0.0
        %719 = vmatpush1.msra.mxu0 0.0
        %720 = vmatprep.subr.mxu0 0.0
        %721 = vmatpush1.msra.mxu0 0.0
        %722 = vmatprep.subr.mxu0 0.0
        %723 = vmatpush1.msra.mxu0 0.0
        %724 = vmatprep.subr.mxu0 0.0
        %725 = vmatpush1.msra.mxu0 0.0
        %726 = vmatprep.subr.mxu0 0.0
        %727 = vmatpush1.msra.mxu0 0.0
        %728 = vmatprep.subr.mxu0 0.0
        %729 = vmatpush1.msra.mxu0 0.0
        %730 = vmatprep.subr.mxu0 0.0
        %731 = vmatpush1.msra.mxu0 0.0
        %732 = vmatprep.subr.mxu0 0.0
        %733 = vmatpush1.msra.mxu0 0.0
        %734 = vmatprep.subr.mxu0 0.0
        %735 = vmatpush1.msra.mxu0 0.0
        %736 = vmatprep.subr.mxu0 0.0
        %737 = vmatpush1.msra.mxu0 0.0
        %738 = vmatprep.subr.mxu0 0.0
        %739 = vmatpush1.msra.mxu0 0.0
        %740 = vmatprep.subr.mxu0 0.0
        %741 = vmatpush1.msra.mxu0 0.0
        %742 = vmatprep.subr.mxu0 0.0
        %743 = vmatpush1.msra.mxu0 0.0
        %744 = vmatprep.subr.mxu0 0.0
        %745 = vmatpush1.msra.mxu0 0.0
        %746 = vmatprep.subr.mxu0 0.0
        %747 = vmatpush1.msra.mxu0 0.0
        %748 = vmatprep.subr.mxu0 0.0
        %749 = vmatpush1.msra.mxu0 0.0
        %750 = vmatprep.subr.mxu0 0.0
        %751 = vmatpush1.msra.mxu0 0.0
        %752 = vmatprep.subr.mxu0 0.0
        %753 = vmatpush1.msra.mxu0 0.0
        %754 = vmatprep.subr.mxu0 0.0
        %755 = vmatpush1.msra.mxu0 0.0
        %756 = vmatprep.subr.mxu0 0.0
        %757 = vmatpush1.msra.mxu0 0.0
        %758 = vmatprep.subr.mxu0 0.0
        %759 = vmatpush1.msra.mxu0 0.0
        %760 = vmatprep.subr.mxu0 0.0
        %761 = vmatpush1.msra.mxu0 0.0
        %762 = vmatprep.subr.mxu0 0.0
        %763 = vmatpush1.msra.mxu0 0.0
        %764 = vmatprep.subr.mxu0 0.0
        %765 = vmatpush1.msra.mxu0 0.0
        %766 = vmatprep.subr.mxu0 0.0
        %767 = vmatpush1.msra.mxu0 0.0
        %768 = vmatprep.subr.mxu0 0.0
        %769 = vmatpush1.msra.mxu0 0.0
        %770 = vmatprep.mubr.f32.mxu0 0.0
        %771 = vmatmul.mubr.f32.gmra.mrb[0].mxu0 %v659
        %v772 = vpop.f32.mrb[0].mxu0
        %v773 = vadd.f32 %v655, %v772
        %v774 = vpop.f32.mrb[0].mxu0
        %775 = vmatprep.mubr.f32.mxu0 0.0
        %776 = vmatmul.mubr.f32.gmra.mrb[0].mxu0 %v662
        %v777 = vpop.f32.mrb[0].mxu0
        %v778 = vadd.f32 %v655, %v777
        %v779 = vpop.f32.mrb[0].mxu0
        %780 = vmatprep.mubr.f32.mxu0 0.0
        %781 = vmatmul.mubr.f32.gmra.mrb[0].mxu0 %v665
        %v782 = vpop.f32.mrb[0].mxu0
        %v783 = vadd.f32 %v655, %v782
        %v784 = vpop.f32.mrb[0].mxu0
        %785 = vmatprep.mubr.f32.mxu0 0.0
        %786 = vmatmul.mubr.f32.gmra.mrb[0].mxu0 %v668
        %v787 = vpop.f32.mrb[0].mxu0
        %v788 = vadd.f32 %v655, %v787
        %v789 = vpop.f32.mrb[0].mxu0
        %790 = vmatprep.mubr.f32.mxu0 0.0
        %791 = vmatmul.mubr.f32.gmra.mrb[0].mxu0 %v671
        %v792 = vpop.f32.mrb[0].mxu0
        %v793 = vadd.f32 %v655, %v792
        %v794 = vpop.f32.mrb[0].mxu0
        %795 = vmatprep.mubr.f32.mxu0 0.0
        %796 = vmatmul.mubr.f32.gmra.mrb[0].mxu0 %v674
        %v797 = vpop.f32.mrb[0].mxu0
        %v798 = vadd.f32 %v655, %v797
        %v799 = vpop.f32.mrb[0].mxu0
        %800 = vmatprep.mubr.f32.mxu0 0.0
        %801 = vmatmul.mubr.f32.gmra.mrb[0].mxu0 %v677
        %v802 = vpop.f32.mrb[0].mxu0
        %v803 = vadd.f32 %v655, %v802
        %v804 = vpop.f32.mrb[0].mxu0
        %805 = vmatprep.mubr.f32.mxu0 0.0
        %806 = vmatmul.mubr.f32.gmra.mrb[0].mxu0 %v680
        %v807 = vpop.f32.mrb[0].mxu0
        %v808 = vadd.f32 %v655, %v807
        %v809 = vpop.f32.mrb[0].mxu0
        %810 = vmatprep.mubr.f32.mxu0 0.0
        %811 = vmatmul.mubr.f32.gmra.mrb[0].mxu0 %v683
        %v812 = vpop.f32.mrb[0].mxu0
        %v813 = vadd.f32 %v655, %v812
        %v814 = vpop.f32.mrb[0].mxu0
        %815 = vmatprep.mubr.f32.mxu0 0.0
        %816 = vmatmul.mubr.f32.gmra.mrb[0].mxu0 %v686
        %v817 = vpop.f32.mrb[0].mxu0
        %v818 = vadd.f32 %v655, %v817
        %v819 = vpop.f32.mrb[0].mxu0
        %820 = vmatprep.mubr.f32.mxu0 0.0
        %821 = vmatmul.mubr.f32.gmra.mrb[0].mxu0 %v689
        %v822 = vpop.f32.mrb[0].mxu0
        %v823 = vadd.f32 %v655, %v822
        %v824 = vpop.f32.mrb[0].mxu0
        %825 = vmatprep.mubr.f32.mxu0 0.0
        %826 = vmatmul.mubr.f32.gmra.mrb[0].mxu0 %v692
        %v827 = vpop.f32.mrb[0].mxu0
        %v828 = vadd.f32 %v655, %v827
        %v829 = vpop.f32.mrb[0].mxu0
        %830 = vmatprep.mubr.f32.mxu0 0.0
        %831 = vmatmul.mubr.f32.gmra.mrb[0].mxu0 %v695
        %v832 = vpop.f32.mrb[0].mxu0
        %v833 = vadd.f32 %v655, %v832
        %v834 = vpop.f32.mrb[0].mxu0
        %835 = vmatprep.mubr.f32.mxu0 0.0
        %836 = vmatmul.mubr.f32.gmra.mrb[0].mxu0 %v698
        %v837 = vpop.f32.mrb[0].mxu0
        %v838 = vadd.f32 %v655, %v837
        %v839 = vpop.f32.mrb[0].mxu0
        %840 = vmatprep.mubr.f32.mxu0 0.0
        %841 = vmatmul.mubr.f32.gmra.mrb[0].mxu0 %v701
        %v842 = vpop.f32.mrb[0].mxu0
        %v843 = vadd.f32 %v655, %v842
        %v844 = vpop.f32.mrb[0].mxu0
        %845 = vmatprep.mubr.f32.mxu0 0.0
        %846 = vmatmul.mubr.f32.gmra.mrb[0].mxu0 %v704
        %v847 = vpop.f32.mrb[0].mxu0
        %v848 = vadd.f32 %v655, %v847
        %v849 = vpop.f32.mrb[0].mxu0
        %850 = vdwg.mxu0
        %851 = vmax.xlane.f32.xlu0 %v773
        %v852 = vpop.xlane.xlu0 %851
        %853 = vmax.xlane.f32.xlu0 %v778
        %v854 = vpop.xlane.xlu0 %853
        %855 = vmax.xlane.f32.xlu0 %v783
        %v856 = vpop.xlane.xlu0 %855
        %857 = vmax.xlane.f32.xlu0 %v788
        %v858 = vpop.xlane.xlu0 %857
        %859 = vmax.xlane.f32.xlu0 %v793
        %v860 = vpop.xlane.xlu0 %859
        %861 = vmax.xlane.f32.xlu0 %v798
        %v862 = vpop.xlane.xlu0 %861
        %863 = vmax.xlane.f32.xlu0 %v803
        %v864 = vpop.xlane.xlu0 %863
        %865 = vmax.xlane.f32.xlu0 %v808
        %v866 = vpop.xlane.xlu0 %865
        %867 = vmax.xlane.f32.xlu0 %v813
        %v868 = vpop.xlane.xlu0 %867
        %869 = vmax.xlane.f32.xlu0 %v818
        %v870 = vpop.xlane.xlu0 %869
        %871 = vmax.xlane.f32.xlu0 %v823
        %v872 = vpop.xlane.xlu0 %871
        %873 = vmax.xlane.f32.xlu0 %v828
        %v874 = vpop.xlane.xlu0 %873
        %875 = vmax.xlane.f32.xlu0 %v833
        %v876 = vpop.xlane.xlu0 %875
        %877 = vmax.xlane.f32.xlu0 %v838
        %v878 = vpop.xlane.xlu0 %877
        %879 = vmax.xlane.f32.xlu0 %v843
        %v880 = vpop.xlane.xlu0 %879
        %881 = vmax.xlane.f32.xlu0 %v848
        %v882 = vpop.xlane.xlu0 %881
        %v883 = vsub.f32 %v773, %v852
        %v884 = vsub.f32 %v778, %v854
        %v885 = vsub.f32 %v783, %v856
        %v886 = vsub.f32 %v788, %v858
        %v887 = vsub.f32 %v793, %v860
        %v888 = vsub.f32 %v798, %v862
        %v889 = vsub.f32 %v803, %v864
        %v890 = vsub.f32 %v808, %v866
        %v891 = vsub.f32 %v813, %v868
        %v892 = vsub.f32 %v818, %v870
        %v893 = vsub.f32 %v823, %v872
        %v894 = vsub.f32 %v828, %v874
        %v895 = vsub.f32 %v833, %v876
        %v896 = vsub.f32 %v838, %v878
        %v897 = vsub.f32 %v843, %v880
        %v898 = vsub.f32 %v848, %v882
        %v899 = vmul.f32 %v883, 1.442695
        %v900 = vpow.pop %v899
        %v901 = vmul.f32 %v884, 1.442695
        %v902 = vpow.pop %v901
        %v903 = vmul.f32 %v885, 1.442695
        %v904 = vpow.pop %v903
        %v905 = vmul.f32 %v886, 1.442695
        %v906 = vpow.pop %v905
        %v907 = vmul.f32 %v887, 1.442695
        %v908 = vpow.pop %v907
        %v909 = vmul.f32 %v888, 1.442695
        %v910 = vpow.pop %v909
        %v911 = vmul.f32 %v889, 1.442695
        %v912 = vpow.pop %v911
        %v913 = vmul.f32 %v890, 1.442695
        %v914 = vpow.pop %v913
        %v915 = vmul.f32 %v891, 1.442695
        %v916 = vpow.pop %v915
        %v917 = vmul.f32 %v892, 1.442695
        %v918 = vpow.pop %v917
        %v919 = vmul.f32 %v893, 1.442695
        %v920 = vpow.pop %v919
        %v921 = vmul.f32 %v894, 1.442695
        %v922 = vpow.pop %v921
        %v923 = vmul.f32 %v895, 1.442695
        %v924 = vpow.pop %v923
        %v925 = vmul.f32 %v896, 1.442695
        %v926 = vpow.pop %v925
        %v927 = vmul.f32 %v897, 1.442695
        %v928 = vpow.pop %v927
        %v929 = vmul.f32 %v898, 1.442695
        %v930 = vpow.pop %v929
        %931 = vadd.xlane.f32.xlu0 %v900
        %v932 = vpop.xlane.xlu0 %931
        %933 = vadd.xlane.f32.xlu0 %v902
        %v934 = vpop.xlane.xlu0 %933
        %935 = vadd.xlane.f32.xlu0 %v904
        %v936 = vpop.xlane.xlu0 %935
        %937 = vadd.xlane.f32.xlu0 %v906
        %v938 = vpop.xlane.xlu0 %937
        %939 = vadd.xlane.f32.xlu0 %v908
        %v940 = vpop.xlane.xlu0 %939
        %941 = vadd.xlane.f32.xlu0 %v910
        %v942 = vpop.xlane.xlu0 %941
        %943 = vadd.xlane.f32.xlu0 %v912
        %v944 = vpop.xlane.xlu0 %943
        %945 = vadd.xlane.f32.xlu0 %v914
        %v946 = vpop.xlane.xlu0 %945
        %947 = vadd.xlane.f32.xlu0 %v916
        %v948 = vpop.xlane.xlu0 %947
        %949 = vadd.xlane.f32.xlu0 %v918
        %v950 = vpop.xlane.xlu0 %949
        %951 = vadd.xlane.f32.xlu0 %v920
        %v952 = vpop.xlane.xlu0 %951
        %953 = vadd.xlane.f32.xlu0 %v922
        %v954 = vpop.xlane.xlu0 %953
        %955 = vadd.xlane.f32.xlu0 %v924
        %v956 = vpop.xlane.xlu0 %955
        %957 = vadd.xlane.f32.xlu0 %v926
        %v958 = vpop.xlane.xlu0 %957
        %959 = vadd.xlane.f32.xlu0 %v928
        %v960 = vpop.xlane.xlu0 %959
        %961 = vadd.xlane.f32.xlu0 %v930
        %v962 = vpop.xlane.xlu0 %961
        %v963 = vrcp.pop %v932
        %v964 = vrcp.pop %v934
        %v965 = vrcp.pop %v936
        %v966 = vrcp.pop %v938
        %v967 = vrcp.pop %v940
        %v968 = vrcp.pop %v942
        %v969 = vrcp.pop %v944
        %v970 = vrcp.pop %v946
        %v971 = vrcp.pop %v948
        %v972 = vrcp.pop %v950
        %v973 = vrcp.pop %v952
        %v974 = vrcp.pop %v954
        %v975 = vrcp.pop %v956
        %v976 = vrcp.pop %v958
        %v977 = vrcp.pop %v960
        %v978 = vrcp.pop %v962
        %v979 = vmul.f32 %v900, %v963
        %v980 = vmul.f32 %v902, %v964
        %v981 = vmul.f32 %v904, %v965
        %v982 = vmul.f32 %v906, %v966
        %v983 = vmul.f32 %v908, %v967
        %v984 = vmul.f32 %v910, %v968
        %v985 = vmul.f32 %v912, %v969
        %v986 = vmul.f32 %v914, %v970
        %v987 = vmul.f32 %v916, %v971
        %v988 = vmul.f32 %v918, %v972
        %v989 = vmul.f32 %v920, %v973
        %v990 = vmul.f32 %v922, %v974
        %v991 = vmul.f32 %v924, %v975
        %v992 = vmul.f32 %v926, %v976
        %v993 = vmul.f32 %v928, %v977
        %v994 = vmul.f32 %v930, %v978
        %995 = vst [vmem:[%s218] sm:$0xff] %v979
        %996 = vst [vmem:[%s218 + $0x8] sm:$0xff] %v980
        %997 = vst [vmem:[%s218 + $0x10] sm:$0xff] %v981
        %998 = vst [vmem:[%s218 + $0x18] sm:$0xff] %v982
        %999 = vst [vmem:[%s218 + $0x20] sm:$0xff] %v983
        %1000 = vst [vmem:[%s218 + $0x28] sm:$0xff] %v984
        %1001 = vst [vmem:[%s218 + $0x30] sm:$0xff] %v985
        %1002 = vst [vmem:[%s218 + $0x38] sm:$0xff] %v986
        %1003 = vst [vmem:[%s218 + $0x40] sm:$0xff] %v987
        %1004 = vst [vmem:[%s218 + $0x48] sm:$0xff] %v988
        %1005 = vst [vmem:[%s218 + $0x50] sm:$0xff] %v989
        %1006 = vst [vmem:[%s218 + $0x58] sm:$0xff] %v990
        %1007 = vst [vmem:[%s218 + $0x60] sm:$0xff] %v991
        %1008 = vst [vmem:[%s218 + $0x68] sm:$0xff] %v992
        %1009 = vst [vmem:[%s218 + $0x70] sm:$0xff] %v993
        %1010 = vst [vmem:[%s218 + $0x78] sm:$0xff] %v994
        %s1011 = sand.u32 %s137, 1
        %s1012 = scalar_lea.sflag [#allocation3], %s1011
        %s1013 = sand.u32 %s137, 1
        %s1014 = smul.addr %s1013, 128
        %s1015 = scalar_lea.vmem [#allocation2], %s1014
        // Predicated region
        $region41: #{tpu_custom_call.1} parent=39 // pred_check
          %p1016 = pneg %p147
        $region42: #{tpu_custom_call.1} parent=39 // pred_check_branch
          %1018 = sbr.rel (%p1016) target = $region44
        $region43: #{tpu_custom_call.1} parent=39 // pred_region
          %s1019 = smul.u32 16, %s19
          %s1021 = ssub.s32 2048, 2048
          %1022 = vsyncadd %s1012, %s1021
          %s1023 = smul.addr %s1019, 128
          %s1024 = scalar_lea.hbm %s5, %s1023
          %s1025 = sshll.u32 %s1015, 4
          %s1026 = int_to_ptr.vmem [resolvable:$true] %s1025
          %1031 = dma.vmem_to_hbm [thread:$0]  %s1026, 2048, %s1024, %s1012, 128, 128, 8
        $region44: #{tpu_custom_call.1} parent=39 // pred_fallthru
          _
      $region40: #{tpu_custom_call.1} parent=5 // pred_fallthru
        _
      %p1032 = scmp.le.s32.totalorder 2, %s14
      // Predicated region
      $region45: #{tpu_custom_call.1} parent=5 // pred_check
        %p1033 = pneg %p1032
      $region46: #{tpu_custom_call.1} parent=5 // pred_check_branch
        %1035 = sbr.rel (%p1033) target = $region48
      $region47: #{tpu_custom_call.1} parent=5 // pred_region
        %s1036 = ssub.s32 %s14, 2
        // Predicated region
        $region49: #{tpu_custom_call.1} parent=47 // pred_check
          %p1037 = pneg %p153
        $region50: #{tpu_custom_call.1} parent=47 // pred_check_branch
          %1039 = sbr.rel (%p1037) target = $region52
        $region51: #{tpu_custom_call.1} parent=47 // pred_region
          %s1040 = sand.u32 %s138, 1
          %s1041 = scalar_lea.sflag [#allocation3], %s1040
          %s1042 = sand.u32 %s138, 1
          %s1043 = smul.addr %s1042, 128
          %s1044 = scalar_lea.vmem [#allocation2], %s1043
          %1045 = dma.done %s1041, 2048
        $region52: #{tpu_custom_call.1} parent=47 // pred_fallthru
          _
      $region48: #{tpu_custom_call.1} parent=5 // pred_fallthru
        _
    $region6: #{tpu_custom_call.1} parent=1 // loop_footer
      %s18 = sadd.s32 1, %s14
    $region7: #{tpu_custom_call.1} parent=1 // loop_footer_branch
      %13 = sbr.rel target = $region3
    $region8: #{tpu_custom_call.1} parent=1 // loop_exit
      _
    %1046 = vsyncpa [#allocation3], 1
    %s1047 = scalar_lea.sflag [#allocation3], 1
    %1048 = vsyncpa %s1047, 1

</llo_original>
